<compile_context>
chip_gen: v7x
topology: tpu7x:2x2x1
jax: 0.10.0
libtpu: 0.0.40
codegen_flags: <defaults>
</compile_context>

<pallas_src>
import jax
import jax.numpy as jnp
from jax.experimental import pallas as pl
from jax.experimental.pallas import tpu as pltpu


_SINGLE_K_MAX = 2048   # Cin above this uses the split-K reduction path.
_HW_TILE_CAP = 512     # lane-tile cap over H*W (v6e sweep: ~85% of HBM roofline at 512).


def _upconv_gemm_kernel(w_ref, x_ref, o_ref):
    """Single-K path: o[n, :, j-tile] = W^T @ x[n, :, j-tile].

    w_ref: (Cout*4, Cin)      bf16, grid-resident LHS (tiny)
    x_ref: (1, Cin, t_hw)     f32 activation tile; cast to bf16 in VMEM (no wrapper cast pass)
    o_ref: (1, Cout*4, t_hw)  f32; last dim >= 128 -> unmasked, lane-dense stores
    """
    x = x_ref[0].astype(jnp.bfloat16)
    o_ref[0] = jnp.dot(w_ref[...], x, preferred_element_type=jnp.float32)


def _upconv_gemm_split_k_kernel(w_ref, x_ref, o_ref):
    """Split-K path (Cin > _SINGLE_K_MAX): accumulate straight into the VMEM-resident
    f32 output block (its BlockSpec is invariant along k) -- no accumulator scratch."""
    @pl.when(pl.program_id(2) == 0)
    def _init():
        o_ref[...] = jnp.zeros_like(o_ref)

    x = x_ref[0].astype(jnp.bfloat16)
    o_ref[0] += jnp.dot(w_ref[...], x, preferred_element_type=jnp.float32)


def _choose_hw_tile(hw, n_batch, cap=_HW_TILE_CAP):
    """Lane-tile over H*W: multiple of 128 (lane-dense stores), divides hw exactly (no
    pad / slice-back HBM passes), as large as the cap allows, and split so the parallel
    grid has >= 2 tiles when possible (keeps both v7x TensorCores busy)."""
    if hw % 128 != 0:
        return hw                              # full-extent block is always legal
    t = min(cap - cap % 128, hw)
    while t > 128 and hw % t != 0:
        t -= 128
    if n_batch * (hw // t) < 2:                # only one parallel tile -> split HW in half
        half = t // 2
        if half >= 128 and half % 128 == 0 and hw % half == 0:
            t = half
    return t


def _round_up(v, m):
    return (v + m - 1) // m * m


def upconv_block_forward(x, weight):
    """ConvTranspose2d(kernel_size=2, stride=2, bias=False) forward.

    x:      (N, Cin, H, W)     float32, NCHW (matches the PyTorch module)
    weight: (Cin, Cout, 2, 2)  PyTorch ConvTranspose2d weight layout
    returns (N, Cout, 2H, 2W)  float32
    """
    N, Cin, H, W = x.shape
    Cin_w, Cout, kh, kw = weight.shape
    assert Cin == Cin_w and (kh, kw) == (2, 2)
    HW = H * W
    Cout4 = Cout * 4

    # RHS: free reshape of the contiguous NCHW activation (no transpose pass).
    x3 = x.reshape(N, Cin, HW)
    # LHS: tiny weight -> (Cout*4, Cin), transposed + cast once in the wrapper.
    wT = jnp.transpose(weight.reshape(Cin, Cout4)).astype(jnp.bfloat16)

    t_hw = _choose_hw_tile(HW, N)
    grid_hw = HW // t_hw

    if Cin <= _SINGLE_K_MAX:
        kernel = _upconv_gemm_kernel
        tk = Cin
        grid = (N, grid_hw)
        in_specs = [
            pl.BlockSpec((Cout4, Cin), lambda n, j: (0, 0)),
            pl.BlockSpec((1, Cin, t_hw), lambda n, j: (n, 0, j)),
        ]
        out_specs = pl.BlockSpec((1, Cout4, t_hw), lambda n, j: (n, 0, j))
        dims = ("parallel", "parallel")
    else:
        # TODO(synk): rare for UpConvBlock; this path pads Cin to a tile multiple (extra pass).
        kernel = _upconv_gemm_split_k_kernel
        tk = 1024
        Kp = _round_up(Cin, tk)
        if Kp != Cin:
            x3 = jnp.pad(x3, ((0, 0), (0, Kp - Cin), (0, 0)))
            wT = jnp.pad(wT, ((0, 0), (0, Kp - Cin)))
        grid = (N, grid_hw, Kp // tk)
        in_specs = [
            pl.BlockSpec((Cout4, tk), lambda n, j, k: (0, k)),
            pl.BlockSpec((1, tk, t_hw), lambda n, j, k: (n, k, j)),
        ]
        out_specs = pl.BlockSpec((1, Cout4, t_hw), lambda n, j, k: (n, 0, j))
        dims = ("parallel", "parallel", "arbitrary")

    # Explicit VMEM budget with headroom (double-buffered operand/output blocks).
    need = 2 * (tk * t_hw * 4 + Cout4 * t_hw * 4 + Cout4 * tk * 2)
    vmem_limit = int(min(max(need + (8 << 20), 32 << 20), 48 << 20))

    cost = pl.CostEstimate(
        flops=2 * N * HW * Cin * Cout4,
        transcendentals=0,
        bytes_accessed=(x3.size * x3.dtype.itemsize
                        + wT.size * wT.dtype.itemsize
                        + N * Cout4 * HW * 4),
    )

    out3 = pl.pallas_call(
        kernel,
        out_shape=jax.ShapeDtypeStruct((N, Cout4, HW), jnp.float32),
        grid_spec=pltpu.PrefetchScalarGridSpec(
            num_scalar_prefetch=0,
            grid=grid,
            in_specs=in_specs,
            out_specs=out_specs,
        ),
        compiler_params=pltpu.CompilerParams(
            dimension_semantics=dims,
            vmem_limit_bytes=vmem_limit,
        ),
        cost_estimate=cost,
    )(wT, x3)

    # Pixel shuffle: GEMM rows are (cout, dy, dx); interleave into (2H, 2W). Single XLA copy.
    out = out3.reshape(N, Cout, 2, 2, H, W)
    out = jnp.transpose(out, (0, 1, 4, 2, 5, 3))      # (N, Cout, H, dy, W, dx)
    return out.reshape(N, Cout, 2 * H, 2 * W)


if __name__ == "__main__":
    key = jax.random.PRNGKey(0)
    k_x, k_w = jax.random.split(key)

    batch, in_ch, out_ch, hw = 2, 32, 16, 16
    x = jax.random.normal(k_x, (batch, in_ch, hw, hw), jnp.float32)
    w = jax.random.normal(k_w, (in_ch, out_ch, 2, 2), jnp.float32) / jnp.sqrt(4.0 * in_ch)

    fwd = jax.jit(upconv_block_forward)
    out = jax.block_until_ready(fwd(x, w))

    assert out.shape == (batch, out_ch, 2 * hw, 2 * hw), out.shape
    assert bool(jnp.all(jnp.isfinite(out)))

    # Correctness vs a pure-JAX reference (bf16 MXU operands -> relaxed tolerance).
    ref = jnp.einsum("nchw,cokl->nohkwl", x, w).reshape(batch, out_ch, 2 * hw, 2 * hw)
    rel_err = jnp.max(jnp.abs(out - ref)) / (jnp.max(jnp.abs(ref)) + 1e-6)
    assert float(rel_err) < 3e-2, float(rel_err)

    print("KERNEL_OK")
</pallas_src>

<mosaic_0001>
module attributes {stable_mosaic.version = 11 : i64} {
  func.func @_upconv_gemm_kernel(%arg0: i32, %arg1: i32, %arg2: memref<64x32xbf16, #tpu.memory_space<vmem>>, %arg3: memref<1x32x256xf32, #tpu.memory_space<vmem>>, %arg4: memref<1x64x256xf32, #tpu.memory_space<vmem>>) attributes {dimension_semantics = [#tpu.dimension_semantics<parallel>, #tpu.dimension_semantics<parallel>], iteration_bounds = array<i64: 2, 1>, scalar_prefetch = 0 : i64, scratch_operands = 0 : i64, tpu.core_type = #tpu.core_type<tc>, window_params = [{pipeline_mode = #tpu.pipeline_mode<synchronous>, transform_indices = @transform_0, window_bounds = array<i64: 64, 32>}, {transform_indices = @transform_1, window_bounds = array<i64: 1, 32, 256>}, {transform_indices = @transform_2, window_bounds = array<i64: 1, 64, 256>}]} {
    %c0 = arith.constant 0 : index
    %c0_0 = arith.constant 0 : index
    %c0_1 = arith.constant 0 : index
    %0 = vector.load %arg3[%c0, %c0_0, %c0_1] : memref<1x32x256xf32, #tpu.memory_space<vmem>>, vector<1x32x256xf32>
    %1 = vector.shape_cast %0 : vector<1x32x256xf32> to vector<32x256xf32>
    %2 = arith.truncf %1 : vector<32x256xf32> to vector<32x256xbf16>
    %c0_2 = arith.constant 0 : index
    %c0_3 = arith.constant 0 : index
    %3 = vector.load %arg2[%c0_2, %c0_3] : memref<64x32xbf16, #tpu.memory_space<vmem>>, vector<64x32xbf16>
    %cst = arith.constant dense<0.000000e+00> : vector<64x256xf32>
    %4 = tpu.matmul %3, %2, %cst {dimension_numbers = #tpu.dot_dimension_numbers<[1], [0], [0], [1], [0, 0, 1, 1], [], []>} : vector<64x32xbf16>, vector<32x256xbf16>, vector<64x256xf32> -> vector<64x256xf32>
    %c0_4 = arith.constant 0 : index
    %c0_5 = arith.constant 0 : index
    %c0_6 = arith.constant 0 : index
    %5 = vector.load %arg4[%c0_4, %c0_5, %c0_6] : memref<1x64x256xf32, #tpu.memory_space<vmem>>, vector<1x64x256xf32>
    %6 = vector.shape_cast %5 : vector<1x64x256xf32> to vector<64x256xf32>
    %7 = vector.shape_cast %4 : vector<64x256xf32> to vector<1x64x256xf32>
    tpu.vector_store %arg4[%c0_4, %c0_5, %c0_6], %7 {strides = array<i32>} : memref<1x64x256xf32, #tpu.memory_space<vmem>>, vector<1x64x256xf32>,
    return
  }
  func.func @transform_0(%arg0: i32, %arg1: i32) -> (i32, i32) {
    %c0_i32 = arith.constant 0 : i32
    %c0_i32_0 = arith.constant 0 : i32
    %c0_i32_1 = arith.constant 0 : i32
    return %c0_i32, %c0_i32_0 : i32, i32
  }
  func.func @transform_1(%arg0: i32, %arg1: i32) -> (i32, i32, i32) {
    %c0_i32 = arith.constant 0 : i32
    %c0_i32_0 = arith.constant 0 : i32
    return %arg0, %c0_i32, %arg1 : i32, i32, i32
  }
  func.func @transform_2(%arg0: i32, %arg1: i32) -> (i32, i32, i32) {
    %c0_i32 = arith.constant 0 : i32
    %c0_i32_0 = arith.constant 0 : i32
    return %arg0, %c0_i32, %arg1 : i32, i32, i32
  }
}

</mosaic_0001>

<llo_original>
// kernel: upconv_block_forward.1
$region0: #{upconv_block_forward.1}
  #allocation0 [shape = 'u32[]', space=smem, size = 0x4, offset = 0x4, fixed_abs, tag = 'smem constant byte address 0x4 - core index']
  #allocation1 [shape = 'u32[144,128]{1,0:T(1,128)}', space=vmem, size = 0x12000, scoped, tag = 'internal scratch']
  %s0 = inlined_call_operand.vmem [shape: bf16[64,32], index: 0, kind: input, shape index: {}]
  %s1 = inlined_call_operand.vmem [shape: f32[2,32,256], index: 1, kind: input, shape index: {}]
  %s2 = inlined_call_operand.vmem [shape: f32[2,64,256], index: 2, kind: output, shape index: {}]
  %s3 = sld [smem:[#allocation0]]
  $region41: #{upconv_block_forward.1} parent=0
    _
  %s5 = ssub.s32 1, %s3
  %s6 = scalar_select 0, %s5, %s3
  loop: start=0, step=1, limit=4
  $region2: #{upconv_block_forward.1} parent=0 // loop_pre_header
    _
  $region3: #{upconv_block_forward.1} parent=0 // loop_header
    %s8 = sphi 0, %s12
    %p9 = scmp.ge.s32.totalorder %s8, 4
    %s15 = sphi 0, %s27
    %s16 = sphi 0, %s23
    %s17 = sphi 0, %s15
    %s18 = sphi 0, %s16
    %s19 = sphi 0, %s17
    %s20 = sphi 0, %s18
    %s28 = sphi 0, %s28
    %s30 = sphi 0, %s28
    %s31 = sphi 0, %s30
    %s45 = sphi 0, %s31
    %s53 = sphi 0, %s55
    %s56 = sphi 0, %s53
    %s57 = sphi 0, %s56
    %s73 = sphi 0, %s57
    %s81 = sphi 0, %s83
    %s84 = sphi 0, %s81
    %s85 = sphi 0, %s84
    %s101 = sphi 0, %s85
  $region4: #{upconv_block_forward.1} parent=0 // loop_header_branch
    %11 = sbr.rel (%p9) target = $region8
  $region5: #{upconv_block_forward.1} parent=0 // loop_body
    %s13 = ssub.s32 %s8, 1
    %s14 = ssub.s32 %s8, 2
    %s21 = sadd.s32 1, %s16
    %p22 = scmp.ge.s32.totalorder %s21, 1
    %s23 = scalar_select %p22, 0, %s21
    %s24 = sadd.s32 1, %s15
    %s25 = scalar_select %p22, %s24, %s15
    %p26 = scmp.ge.s32.totalorder %s25, 2
    %s27 = scalar_select %p26, 0, %s25
    %s29 = sadd.s32 %s28, 1
    %p32 = scmp.eq.s32.totalorder %s8, 1
    %p33 = scmp.ne.s32.totalorder %s28, %s30
    %p34 = scmp.eq.s32.totalorder %s8, 0
    %p35 = por %p33, %p34
    %p36 = scmp.ne.s32.totalorder %s28, %s30
    %p37 = scmp.eq.s32.totalorder %s13, 1
    %p38 = por %p36, %p37
    %p39 = scmp.ne.s32.totalorder %s30, %s31
    %p40 = scmp.eq.s32.totalorder %s13, 0
    %p41 = por %p39, %p40
    %p42 = scmp.ne.s32.totalorder %s30, %s31
    %p43 = scmp.eq.s32.totalorder %s14, 1
    %p44 = por %p42, %p43
    %p46 = scmp.ne.s32.totalorder %s31, %s45
    %p47 = scmp.eq.s32.totalorder %s14, 0
    %p48 = por %p46, %p47
    %s49 = ssub.s32 %s15, %s27
    %s50 = ssub.s32 %s16, %s23
    %s51 = sor.u32 %s49, %s50
    %p52 = scmp.eq.s32.totalorder %s51, 0
    %s54 = sadd.s32 %s53, 1
    %s55 = scalar_select %p52, %s53, %s54
    %p58 = pneg %p52
    %p59 = scmp.eq.s32.totalorder %s8, 1
    %p60 = por %p58, %p59
    %p61 = scmp.ne.s32.totalorder %s53, %s56
    %p62 = scmp.eq.s32.totalorder %s8, 0
    %p63 = por %p61, %p62
    %p64 = scmp.ne.s32.totalorder %s53, %s56
    %p65 = scmp.eq.s32.totalorder %s13, 1
    %p66 = por %p64, %p65
    %p67 = scmp.ne.s32.totalorder %s56, %s57
    %p68 = scmp.eq.s32.totalorder %s13, 0
    %p69 = por %p67, %p68
    %p70 = scmp.ne.s32.totalorder %s56, %s57
    %p71 = scmp.eq.s32.totalorder %s14, 1
    %p72 = por %p70, %p71
    %p74 = scmp.ne.s32.totalorder %s57, %s73
    %p75 = scmp.eq.s32.totalorder %s14, 0
    %p76 = por %p74, %p75
    %s77 = ssub.s32 %s15, %s27
    %s78 = ssub.s32 %s16, %s23
    %s79 = sor.u32 %s77, %s78
    %p80 = scmp.eq.s32.totalorder %s79, 0
    %s82 = sadd.s32 %s81, 1
    %s83 = scalar_select %p80, %s81, %s82
    %p86 = pneg %p80
    %p87 = scmp.eq.s32.totalorder %s8, 1
    %p88 = por %p86, %p87
    %p89 = scmp.ne.s32.totalorder %s81, %s84
    %p90 = scmp.eq.s32.totalorder %s8, 0
    %p91 = por %p89, %p90
    %p92 = scmp.ne.s32.totalorder %s81, %s84
    %p93 = scmp.eq.s32.totalorder %s13, 1
    %p94 = por %p92, %p93
    %p95 = scmp.ne.s32.totalorder %s84, %s85
    %p96 = scmp.eq.s32.totalorder %s13, 0
    %p97 = por %p95, %p96
    %p98 = scmp.ne.s32.totalorder %s84, %s85
    %p99 = scmp.eq.s32.totalorder %s14, 1
    %p100 = por %p98, %p99
    %p102 = scmp.ne.s32.totalorder %s85, %s101
    %p103 = scmp.eq.s32.totalorder %s14, 0
    %p104 = por %p102, %p103
    %p105 = scmp.le.s32.totalorder 1, %s8
    %p106 = scmp.lt.s32.totalorder %s8, 3
    %p107 = pnand %p105, %p106
    %p108 = pneg %p107
    // Predicated region
    $region9: #{upconv_block_forward.1} parent=5 // pred_check
      _
    $region10: #{upconv_block_forward.1} parent=5 // pred_check_branch
      %110 = sbr.rel (%p107) target = $region12
    $region11: #{upconv_block_forward.1} parent=5 // pred_region
      %s111 = ssub.s32 %s8, 1
      // Predicated region
      $region13: #{upconv_block_forward.1} parent=11 // pred_check
        %p112 = pneg %p41
      $region14: #{upconv_block_forward.1} parent=11 // pred_check_branch
        %114 = sbr.rel (%p112) target = $region16
      $region15: #{upconv_block_forward.1} parent=11 // pred_region
        _
      $region16: #{upconv_block_forward.1} parent=11 // pred_fallthru
        _
    $region12: #{upconv_block_forward.1} parent=5 // pred_fallthru
      _
    %p115 = scmp.lt.s32.totalorder %s8, 2
    // Predicated region
    $region17: #{upconv_block_forward.1} parent=5 // pred_check
      %p116 = pneg %p115
    $region18: #{upconv_block_forward.1} parent=5 // pred_check_branch
      %118 = sbr.rel (%p116) target = $region20
    $region19: #{upconv_block_forward.1} parent=5 // pred_region
      // Predicated region
      $region21: #{upconv_block_forward.1} parent=19 // pred_check
        %p119 = pneg %p63
      $region22: #{upconv_block_forward.1} parent=19 // pred_check_branch
        %121 = sbr.rel (%p119) target = $region24
      $region23: #{upconv_block_forward.1} parent=19 // pred_region
        %s122 = smul.u32 2, %s16
        %p123 = scmp.lt.s32.totalorder %s15, 1
        %s124 = scalar_select %p123, %s15, 1
        %p125 = scmp.lt.s32.totalorder %s122, 1
        %s126 = scalar_select %p125, %s122, 1
        %s127 = smul.addr %s124, 8
        %s128 = sadd.s32 %s126, %s127
        %s129 = smul.addr %s128, 8
        %s130 = scalar_lea.vmem %s1, %s129
        %s131 = smul.u32 2, %s16
      $region24: #{upconv_block_forward.1} parent=19 // pred_fallthru
        _
    $region20: #{upconv_block_forward.1} parent=5 // pred_fallthru
      _
    %p132 = scmp.le.s32.totalorder 1, %s8
    %p133 = scmp.lt.s32.totalorder %s8, 3
    %p134 = pnand %p132, %p133
    %p135 = pneg %p134
    // Predicated region
    $region25: #{upconv_block_forward.1} parent=5 // pred_check
      _
    $region26: #{upconv_block_forward.1} parent=5 // pred_check_branch
      %137 = sbr.rel (%p134) target = $region28
    $region27: #{upconv_block_forward.1} parent=5 // pred_region
      %s138 = ssub.s32 %s8, 1
      %p139 = pneg %p41
      %p140 = pneg %p38
      %s141 = smul.u32 2, %s18
      %p142 = scmp.lt.s32.totalorder %s17, 1
      %s143 = scalar_select %p142, %s17, 1
      %p144 = scmp.lt.s32.totalorder %s141, 1
      %s145 = scalar_select %p144, %s141, 1
      %s146 = smul.addr %s143, 8
      %s147 = sadd.s32 %s145, %s146
      %s148 = smul.addr %s147, 8
      %s149 = scalar_lea.vmem %s1, %s148
      %p150 = pneg %p69
      %p151 = pneg %p66
      %p152 = pneg %p97
      %p153 = pneg %p94
      %s154 = smul.u32 2, %s18
      %p155 = scmp.lt.s32.totalorder %s17, 1
      %s156 = scalar_select %p155, %s17, 1
      %p157 = scmp.lt.s32.totalorder %s154, 1
      %s158 = scalar_select %p157, %s154, 1
      %s159 = smul.addr %s156, 16
      %s160 = sadd.s32 %s158, %s159
      %s161 = smul.addr %s160, 8
      %s162 = scalar_lea.vmem %s2, %s161
      %s163 = smul.u32 2, %s18
      %p164 = scmp.lt.s32.totalorder %s17, 1
      %s165 = scalar_select %p164, %s17, 1
      %p166 = scmp.lt.s32.totalorder %s163, 1
      %s167 = scalar_select %p166, %s163, 1
      %s168 = smul.addr %s165, 8
      %s169 = sadd.s32 %s167, %s168
      %s170 = smul.addr %s169, 8
      %s171 = scalar_lea.vmem %s1, %s170
      %s172 = smul.u32 2, %s18
      %s173 = smul.u32 2, %s18
      %p174 = scmp.lt.s32.totalorder %s17, 1
      %s175 = scalar_select %p174, %s17, 1
      %p176 = scmp.lt.s32.totalorder %s173, 1
      %s177 = scalar_select %p176, %s173, 1
      %s178 = smul.addr %s175, 16
      %s179 = sadd.s32 %s177, %s178
      %s180 = smul.addr %s179, 8
      %s181 = scalar_lea.vmem %s2, %s180
      %s182 = smul.u32 2, %s18
      %v184 = vld [vmem:[%s171] sm:$0xff]
      %v185 = vld [vmem:[%s171 + $0x8] sm:$0xff]
      %v186 = vld [vmem:[%s171 + $0x10] sm:$0xff]
      %v187 = vld [vmem:[%s171 + $0x18] sm:$0xff]
      %v188 = vld [vmem:[%s171 + $0x20] sm:$0xff]
      %v189 = vld [vmem:[%s171 + $0x28] sm:$0xff]
      %v190 = vld [vmem:[%s171 + $0x30] sm:$0xff]
      %v191 = vld [vmem:[%s171 + $0x38] sm:$0xff]
      %v192 = vpack.c.bf16 %v186, %v184
      %v193 = vpack.c.bf16 %v187, %v185
      %v194 = vpack.c.bf16 %v190, %v188
      %v195 = vpack.c.bf16 %v191, %v189
      %v196 = vld [vmem:[%s0] sm:$0xf]
      %v197 = vld [vmem:[%s0 + $0x4] sm:$0xf]
      %v198 = vld [vmem:[%s0 + $0x8] sm:$0xf]
      %v199 = vld [vmem:[%s0 + $0xc] sm:$0xf]
      %v200 = vld [vmem:[%s0 + $0x10] sm:$0xf]
      %v201 = vld [vmem:[%s0 + $0x14] sm:$0xf]
      %v202 = vld [vmem:[%s0 + $0x18] sm:$0xf]
      %v203 = vld [vmem:[%s0 + $0x1c] sm:$0xf]
      %v212 = vunpack.c.l.b16 %v196
      %v213 = vunpack.c.l.b16 %v197
      %v214 = vunpack.c.l.b16 %v198
      %v215 = vunpack.c.l.b16 %v199
      %v216 = vunpack.c.l.b16 %v200
      %v217 = vunpack.c.l.b16 %v201
      %v218 = vunpack.c.l.b16 %v202
      %v219 = vunpack.c.l.b16 %v203
      %v220 = vpack.c.b16 %v213, %v212
      %v221 = vpack.c.b16 %v215, %v214
      %v222 = vpack.c.b16 %v217, %v216
      %v223 = vpack.c.b16 %v219, %v218
      %vm224 = vcmask 261120
      %v226 = vsel %vm224, %v220, 0
      %v229 = vsel %vm224, %v221, 0
      %v232 = vsel %vm224, %v222, 0
      %v235 = vsel %vm224, %v223, 0
      %237 = vmatprep.subr.bf16.mxu0 %v193
      %238 = vmatpush1.bf16.msra.mxu0 %v192
      %239 = vmatprep.subr.bf16.mxu0 %v195
      %240 = vmatpush1.bf16.msra.mxu0 %v194
      %241 = vmatprep.subr.bf16.mxu0 0
      %242 = vmatpush1.bf16.msra.mxu0 0
      %243 = vmatprep.subr.bf16.mxu0 0
      %244 = vmatpush1.bf16.msra.mxu0 0
      %245 = vmatprep.subr.bf16.mxu0 0
      %246 = vmatpush1.bf16.msra.mxu0 0
      %247 = vmatprep.subr.bf16.mxu0 0
      %248 = vmatpush1.bf16.msra.mxu0 0
      %249 = vmatprep.subr.bf16.mxu0 0
      %250 = vmatpush1.bf16.msra.mxu0 0
      %251 = vmatprep.subr.bf16.mxu0 0
      %252 = vmatpush1.bf16.msra.mxu0 0
      %253 = vmatprep.subr.bf16.mxu0 0
      %254 = vmatpush1.bf16.msra.mxu0 0
      %255 = vmatprep.subr.bf16.mxu0 0
      %256 = vmatpush1.bf16.msra.mxu0 0
      %257 = vmatprep.subr.bf16.mxu0 0
      %258 = vmatpush1.bf16.msra.mxu0 0
      %259 = vmatprep.subr.bf16.mxu0 0
      %260 = vmatpush1.bf16.msra.mxu0 0
      %261 = vmatprep.subr.bf16.mxu0 0
      %262 = vmatpush1.bf16.msra.mxu0 0
      %263 = vmatprep.subr.bf16.mxu0 0
      %264 = vmatpush1.bf16.msra.mxu0 0
      %265 = vmatprep.subr.bf16.mxu0 0
      %266 = vmatpush1.bf16.msra.mxu0 0
      %267 = vmatprep.subr.bf16.mxu0 0
      %268 = vmatpush1.bf16.msra.mxu0 0
      %269 = vmatprep.mubr.bf16.mxu0 0
      %270 = vmatmul.mubr.bf16.gmra.mrb[0].mxu0 %v226
      %v271 = vpop.f32.mrb[0].mxu0
      %v272 = vadd.f32 0.0, %v271
      %v273 = vpop.f32.mrb[0].mxu0
      %v274 = vadd.f32 0.0, %v273
      %v275 = vpop.f32.mrb[0].mxu0
      %v276 = vadd.f32 0.0, %v275
      %v277 = vpop.f32.mrb[0].mxu0
      %v278 = vadd.f32 0.0, %v277
      %279 = vmatprep.mubr.bf16.mxu0 0
      %280 = vmatmul.mubr.bf16.gmra.mrb[0].mxu0 %v229
      %v281 = vpop.f32.mrb[0].mxu0
      %v282 = vadd.f32 0.0, %v281
      %v283 = vpop.f32.mrb[0].mxu0
      %v284 = vadd.f32 0.0, %v283
      %v285 = vpop.f32.mrb[0].mxu0
      %v286 = vadd.f32 0.0, %v285
      %v287 = vpop.f32.mrb[0].mxu0
      %v288 = vadd.f32 0.0, %v287
      %289 = vmatprep.mubr.bf16.mxu0 0
      %290 = vmatmul.mubr.bf16.gmra.mrb[0].mxu0 %v232
      %v291 = vpop.f32.mrb[0].mxu0
      %v292 = vadd.f32 0.0, %v291
      %v293 = vpop.f32.mrb[0].mxu0
      %v294 = vadd.f32 0.0, %v293
      %v295 = vpop.f32.mrb[0].mxu0
      %v296 = vadd.f32 0.0, %v295
      %v297 = vpop.f32.mrb[0].mxu0
      %v298 = vadd.f32 0.0, %v297
      %299 = vmatprep.mubr.bf16.mxu0 0
      %300 = vmatmul.mubr.bf16.gmra.mrb[0].mxu0 %v235
      %v301 = vpop.f32.mrb[0].mxu0
      %v302 = vadd.f32 0.0, %v301
      %v303 = vpop.f32.mrb[0].mxu0
      %v304 = vadd.f32 0.0, %v303
      %v305 = vpop.f32.mrb[0].mxu0
      %v306 = vadd.f32 0.0, %v305
      %v307 = vpop.f32.mrb[0].mxu0
      %v308 = vadd.f32 0.0, %v307
      %309 = vdwg.mxu0
      %310 = vst [vmem:[%s181] sm:$0xff] %v272
      %311 = vst [vmem:[%s181 + $0x8] sm:$0xff] %v274
      %312 = vst [vmem:[%s181 + $0x10] sm:$0xff] %v276
      %313 = vst [vmem:[%s181 + $0x18] sm:$0xff] %v278
      %314 = vst [vmem:[%s181 + $0x20] sm:$0xff] %v282
      %315 = vst [vmem:[%s181 + $0x28] sm:$0xff] %v284
      %316 = vst [vmem:[%s181 + $0x30] sm:$0xff] %v286
      %317 = vst [vmem:[%s181 + $0x38] sm:$0xff] %v288
      %318 = vst [vmem:[%s181 + $0x40] sm:$0xff] %v292
      %319 = vst [vmem:[%s181 + $0x48] sm:$0xff] %v294
      %320 = vst [vmem:[%s181 + $0x50] sm:$0xff] %v296
      %321 = vst [vmem:[%s181 + $0x58] sm:$0xff] %v298
      %322 = vst [vmem:[%s181 + $0x60] sm:$0xff] %v302
      %323 = vst [vmem:[%s181 + $0x68] sm:$0xff] %v304
      %324 = vst [vmem:[%s181 + $0x70] sm:$0xff] %v306
      %325 = vst [vmem:[%s181 + $0x78] sm:$0xff] %v308
      %s326 = smul.u32 2, %s18
      %p327 = scmp.lt.s32.totalorder %s17, 1
      %s328 = scalar_select %p327, %s17, 1
      %p329 = scmp.lt.s32.totalorder %s326, 1
      %s330 = scalar_select %p329, %s326, 1
      %s331 = smul.addr %s328, 16
      %s332 = sadd.s32 %s330, %s331
      %s333 = smul.addr %s332, 8
      %s334 = scalar_lea.vmem %s2, %s333
      // Predicated region
      $region29: #{upconv_block_forward.1} parent=27 // pred_check
        %p335 = pneg %p94
      $region30: #{upconv_block_forward.1} parent=27 // pred_check_branch
        %337 = sbr.rel (%p335) target = $region32
      $region31: #{upconv_block_forward.1} parent=27 // pred_region
        %s338 = smul.u32 2, %s18
      $region32: #{upconv_block_forward.1} parent=27 // pred_fallthru
        _
    $region28: #{upconv_block_forward.1} parent=5 // pred_fallthru
      _
    %p339 = scmp.le.s32.totalorder 2, %s8
    // Predicated region
    $region33: #{upconv_block_forward.1} parent=5 // pred_check
      %p340 = pneg %p339
    $region34: #{upconv_block_forward.1} parent=5 // pred_check_branch
      %342 = sbr.rel (%p340) target = $region36
    $region35: #{upconv_block_forward.1} parent=5 // pred_region
      %s343 = ssub.s32 %s8, 2
      // Predicated region
      $region37: #{upconv_block_forward.1} parent=35 // pred_check
        %p344 = pneg %p100
      $region38: #{upconv_block_forward.1} parent=35 // pred_check_branch
        %346 = sbr.rel (%p344) target = $region40
      $region39: #{upconv_block_forward.1} parent=35 // pred_region
        %s347 = smul.u32 2, %s20
        %p348 = scmp.lt.s32.totalorder %s19, 1
        %s349 = scalar_select %p348, %s19, 1
        %p350 = scmp.lt.s32.totalorder %s347, 1
        %s351 = scalar_select %p350, %s347, 1
        %s352 = smul.addr %s349, 16
        %s353 = sadd.s32 %s351, %s352
        %s354 = smul.addr %s353, 8
        %s355 = scalar_lea.vmem %s2, %s354
      $region40: #{upconv_block_forward.1} parent=35 // pred_fallthru
        _
    $region36: #{upconv_block_forward.1} parent=5 // pred_fallthru
      _
  $region6: #{upconv_block_forward.1} parent=0 // loop_footer
    %s12 = sadd.s32 1, %s8
  $region7: #{upconv_block_forward.1} parent=0 // loop_footer_branch
    %7 = sbr.rel target = $region3
  $region8: #{upconv_block_forward.1} parent=0 // loop_exit
    _

</llo_original>
